<compile_context>
chip_gen: v6e
topology: v6e:2x2x1
jax: 0.10.0
libtpu: 0.0.40
codegen_flags: <defaults>
</compile_context>

<pallas_src>
import functools

import numpy as np
import jax
import jax.numpy as jnp
from jax.experimental import pallas as pl
from jax.experimental.pallas import tpu as pltpu


def _object_probability_kernel(ct_ref, ht_ref, py_ref, pre_ref,
                               wct_ref, wht_ref, wpy_ref, wpre_ref, b1_ref,
                               w2_ref, b2_ref, o_ref):
    """One row-tile: 4 fused Linears -> maxout(pairs) -> Linear."""
    y = (jnp.dot(ct_ref[...], wct_ref[...], preferred_element_type=jnp.float32)
         + jnp.dot(ht_ref[...], wht_ref[...], preferred_element_type=jnp.float32)
         + jnp.dot(py_ref[...], wpy_ref[...], preferred_element_type=jnp.float32)
         + jnp.dot(pre_ref[...], wpre_ref[...], preferred_element_type=jnp.float32)
         + b1_ref[...])                                   # (bm, m), cols permuted
    m2 = y.shape[-1] // 2
    # maxout over PyTorch pairs: columns were pre-permuted so pair j = (j, j+m2)
    h = jnp.maximum(y[:, :m2], y[:, m2:])                 # (bm, m/2)
    # TODO(synk): Dropout(p=0.2) omitted (inference-mode identity); training would
    # need pltpu.prng_seed/prng_random_bits masking with 1/(1-p) scaling.
    o_ref[...] = (jnp.dot(h, w2_ref[...], preferred_element_type=jnp.float32)
                  + b2_ref[...]).astype(o_ref.dtype)      # (bm, K)


def prepare_object_probability_params(weights):
    """ONE-TIME weight preprocessing. Call at init and cache the result.

    weights: dict name -> (W, b) with PyTorch convention W: (out, in).
    Returns a dict of device arrays ready for object_probability_forward.
    """
    W_ct, b_ct = weights["fc_ct"]
    W_ht, b_ht = weights["fc_ht"]
    W_py, b_py = weights["fc_p_y"]
    W_pre, b_pre = weights["fc_p_re"]
    W_pr, b_pr = weights["fc_probility"]

    m = W_ct.shape[0]
    assert m % 2 == 0
    # Permute output columns: even columns first, odd second -> pair j = (j, j+m/2)
    perm = np.concatenate([np.arange(0, m, 2), np.arange(1, m, 2)])

    def prep(W):  # (out=m, in) -> (in, m) with permuted columns
        return jnp.asarray(np.asarray(W).T[:, perm], jnp.float32)

    b1 = np.asarray(b_ct) + np.asarray(b_ht) + np.asarray(b_py) + np.asarray(b_pre)
    return {
        "W_ct": prep(W_ct),                                   # (D,   m)
        "W_ht": prep(W_ht),                                   # (n,   m)
        "W_py": prep(W_py),                                   # (m,   m)
        "W_pre": prep(W_pre),                                 # (re_m,m)
        "b1": jnp.asarray(b1[perm][None, :], jnp.float32),    # (1,   m)
        "W2": jnp.asarray(np.asarray(W_pr).T, jnp.float32),   # (m/2, K)
        "b2": jnp.asarray(np.asarray(b_pr)[None, :], jnp.float32),  # (1, K)
    }


@functools.partial(jax.jit, static_argnames=("block_rows",))
def object_probability_forward(ct, ht, p_y, p_re, params, block_rows=256):
    """Fused forward; params must come from prepare_object_probability_params."""
    B = ct.shape[0]
    K = params["W2"].shape[1]
    bm = min(block_rows, B)
    grid = (pl.cdiv(B, bm),)

    def row_spec(cols):
        return pl.BlockSpec((bm, cols), lambda i: (i, 0))

    def full_spec(a):
        return pl.BlockSpec(a.shape, lambda i: (0, 0))

    return pl.pallas_call(
        _object_probability_kernel,
        out_shape=jax.ShapeDtypeStruct((B, K), jnp.float32),
        grid=grid,
        in_specs=[
            row_spec(ct.shape[1]),
            row_spec(ht.shape[1]),
            row_spec(p_y.shape[1]),
            row_spec(p_re.shape[1]),
            full_spec(params["W_ct"]),
            full_spec(params["W_ht"]),
            full_spec(params["W_py"]),
            full_spec(params["W_pre"]),
            full_spec(params["b1"]),
            full_spec(params["W2"]),
            full_spec(params["b2"]),
        ],
        out_specs=pl.BlockSpec((bm, K), lambda i: (i, 0)),
        compiler_params=pltpu.CompilerParams(
            dimension_semantics=("parallel",)),
    )(ct, ht, p_y, p_re,
      params["W_ct"], params["W_ht"], params["W_py"], params["W_pre"],
      params["b1"], params["W2"], params["b2"])


def _init_linear(key, in_features, out_features):
    """Deterministic init mimicking torch.nn.Linear defaults."""
    kw, kb = jax.random.split(key)
    bound = 1.0 / (in_features ** 0.5)
    W = jax.random.uniform(kw, (out_features, in_features), jnp.float32,
                           minval=-bound, maxval=bound)
    b = jax.random.uniform(kb, (out_features,), jnp.float32,
                           minval=-bound, maxval=bound)
    return W, b


def _reference_forward(ct, ht, p_y, p_re, weights):
    """Plain-JAX reference matching the PyTorch forward (eval mode)."""
    def lin(x, wb):
        W, b = wb
        return x @ W.T + b
    out = (lin(ct, weights["fc_ct"]) + lin(ht, weights["fc_ht"])
           + lin(p_y, weights["fc_p_y"]) + lin(p_re, weights["fc_p_re"]))
    B = out.shape[0]
    out = out.reshape(B, -1, 2).max(axis=2)
    # dropout = identity in eval mode
    W, b = weights["fc_probility"]
    return out @ W.T + b


if __name__ == "__main__":
    # params: D=32, n=24, m=64, re_m=16, K=8
    B, D, n, m, re_m, K = 8, 32, 24, 64, 16, 8

    key = jax.random.PRNGKey(0)
    k_ct, k_ht, k_py, k_pre, k_pr, k_i1, k_i2, k_i3, k_i4 = jax.random.split(key, 9)

    weights = {
        "fc_ct": _init_linear(k_ct, D, m),
        "fc_ht": _init_linear(k_ht, n, m),
        "fc_p_y": _init_linear(k_py, m, m),
        "fc_p_re": _init_linear(k_pre, re_m, m),
        "fc_probility": _init_linear(k_pr, m // 2, K),
    }
    # One-time preprocessing (cached; NOT re-run per forward call).
    params = prepare_object_probability_params(weights)

    # --- small check (module-sized batch) ---
    ct = jax.random.normal(k_i1, (B, D), jnp.float32)
    ht = jax.random.normal(k_i2, (B, n), jnp.float32)
    p_y = jax.random.normal(k_i3, (B, m), jnp.float32)
    p_re = jax.random.normal(k_i4, (B, re_m), jnp.float32)

    out = object_probability_forward(ct, ht, p_y, p_re, params)
    out = jax.block_until_ready(out)
    ref = _reference_forward(ct, ht, p_y, p_re, weights)
    assert out.shape == (B, K)
    assert jnp.allclose(out, ref, atol=1e-4, rtol=1e-4), "mismatch vs reference (B=8)"

    # --- batched check: exercises the parallel row grid (2 tiles of 128 rows) ---
    B2 = 256
    kb1, kb2, kb3, kb4 = jax.random.split(jax.random.PRNGKey(1), 4)
    ct2 = jax.random.normal(kb1, (B2, D), jnp.float32)
    ht2 = jax.random.normal(kb2, (B2, n), jnp.float32)
    p_y2 = jax.random.normal(kb3, (B2, m), jnp.float32)
    p_re2 = jax.random.normal(kb4, (B2, re_m), jnp.float32)

    out2 = object_probability_forward(ct2, ht2, p_y2, p_re2, params, block_rows=128)
    out2 = jax.block_until_ready(out2)
    ref2 = _reference_forward(ct2, ht2, p_y2, p_re2, weights)
    assert out2.shape == (B2, K)
    assert jnp.allclose(out2, ref2, atol=1e-4, rtol=1e-4), "mismatch vs reference (B=256)"

    print("KERNEL_OK")
</pallas_src>

<mosaic_0001>
module attributes {stable_mosaic.version = 11 : i64} {
  func.func @_object_probability_kernel(%arg0: i32, %arg1: memref<8x32xf32, #tpu.memory_space<vmem>>, %arg2: memref<8x24xf32, #tpu.memory_space<vmem>>, %arg3: memref<8x64xf32, #tpu.memory_space<vmem>>, %arg4: memref<8x16xf32, #tpu.memory_space<vmem>>, %arg5: memref<32x64xf32, #tpu.memory_space<vmem>>, %arg6: memref<24x64xf32, #tpu.memory_space<vmem>>, %arg7: memref<64x64xf32, #tpu.memory_space<vmem>>, %arg8: memref<16x64xf32, #tpu.memory_space<vmem>>, %arg9: memref<1x64xf32, #tpu.memory_space<vmem>>, %arg10: memref<32x8xf32, #tpu.memory_space<vmem>>, %arg11: memref<1x8xf32, #tpu.memory_space<vmem>>, %arg12: memref<8x8xf32, #tpu.memory_space<vmem>>) attributes {dimension_semantics = [#tpu.dimension_semantics<parallel>], iteration_bounds = array<i64: 1>, scalar_prefetch = 0 : i64, scratch_operands = 0 : i64, tpu.core_type = #tpu.core_type<tc>, window_params = [{transform_indices = @transform_0, window_bounds = array<i64: 8, 32>}, {transform_indices = @transform_1, window_bounds = array<i64: 8, 24>}, {transform_indices = @transform_2, window_bounds = array<i64: 8, 64>}, {transform_indices = @transform_3, window_bounds = array<i64: 8, 16>}, {pipeline_mode = #tpu.pipeline_mode<synchronous>, transform_indices = @transform_4, window_bounds = array<i64: 32, 64>}, {pipeline_mode = #tpu.pipeline_mode<synchronous>, transform_indices = @transform_5, window_bounds = array<i64: 24, 64>}, {pipeline_mode = #tpu.pipeline_mode<synchronous>, transform_indices = @transform_6, window_bounds = array<i64: 64, 64>}, {pipeline_mode = #tpu.pipeline_mode<synchronous>, transform_indices = @transform_7, window_bounds = array<i64: 16, 64>}, {pipeline_mode = #tpu.pipeline_mode<synchronous>, transform_indices = @transform_8, window_bounds = array<i64: 1, 64>}, {pipeline_mode = #tpu.pipeline_mode<synchronous>, transform_indices = @transform_9, window_bounds = array<i64: 32, 8>}, {pipeline_mode = #tpu.pipeline_mode<synchronous>, transform_indices = @transform_10, window_bounds = array<i64: 1, 8>}, {transform_indices = @transform_11, window_bounds = array<i64: 8, 8>}]} {
    %c0 = arith.constant 0 : index
    %c0_0 = arith.constant 0 : index
    %0 = vector.load %arg1[%c0, %c0_0] : memref<8x32xf32, #tpu.memory_space<vmem>>, vector<8x32xf32>
    %c0_1 = arith.constant 0 : index
    %c0_2 = arith.constant 0 : index
    %1 = vector.load %arg5[%c0_1, %c0_2] : memref<32x64xf32, #tpu.memory_space<vmem>>, vector<32x64xf32>
    %cst = arith.constant dense<0.000000e+00> : vector<8x64xf32>
    %2 = tpu.matmul %0, %1, %cst {dimension_numbers = #tpu.dot_dimension_numbers<[1], [0], [0], [1], [0, 0, 1, 1], [], []>} : vector<8x32xf32>, vector<32x64xf32>, vector<8x64xf32> -> vector<8x64xf32>
    %c0_3 = arith.constant 0 : index
    %c0_4 = arith.constant 0 : index
    %3 = vector.load %arg2[%c0_3, %c0_4] : memref<8x24xf32, #tpu.memory_space<vmem>>, vector<8x24xf32>
    %c0_5 = arith.constant 0 : index
    %c0_6 = arith.constant 0 : index
    %4 = vector.load %arg6[%c0_5, %c0_6] : memref<24x64xf32, #tpu.memory_space<vmem>>, vector<24x64xf32>
    %cst_7 = arith.constant dense<0.000000e+00> : vector<8x64xf32>
    %5 = tpu.matmul %3, %4, %cst_7 {dimension_numbers = #tpu.dot_dimension_numbers<[1], [0], [0], [1], [0, 0, 1, 1], [], []>} : vector<8x24xf32>, vector<24x64xf32>, vector<8x64xf32> -> vector<8x64xf32>
    %6 = arith.addf %2, %5 : vector<8x64xf32>
    %c0_8 = arith.constant 0 : index
    %c0_9 = arith.constant 0 : index
    %7 = vector.load %arg3[%c0_8, %c0_9] : memref<8x64xf32, #tpu.memory_space<vmem>>, vector<8x64xf32>
    %c0_10 = arith.constant 0 : index
    %c0_11 = arith.constant 0 : index
    %8 = vector.load %arg7[%c0_10, %c0_11] : memref<64x64xf32, #tpu.memory_space<vmem>>, vector<64x64xf32>
    %cst_12 = arith.constant dense<0.000000e+00> : vector<8x64xf32>
    %9 = tpu.matmul %7, %8, %cst_12 {dimension_numbers = #tpu.dot_dimension_numbers<[1], [0], [0], [1], [0, 0, 1, 1], [], []>} : vector<8x64xf32>, vector<64x64xf32>, vector<8x64xf32> -> vector<8x64xf32>
    %10 = arith.addf %6, %9 : vector<8x64xf32>
    %c0_13 = arith.constant 0 : index
    %c0_14 = arith.constant 0 : index
    %11 = vector.load %arg4[%c0_13, %c0_14] : memref<8x16xf32, #tpu.memory_space<vmem>>, vector<8x16xf32>
    %c0_15 = arith.constant 0 : index
    %c0_16 = arith.constant 0 : index
    %12 = vector.load %arg8[%c0_15, %c0_16] : memref<16x64xf32, #tpu.memory_space<vmem>>, vector<16x64xf32>
    %cst_17 = arith.constant dense<0.000000e+00> : vector<8x64xf32>
    %13 = tpu.matmul %11, %12, %cst_17 {dimension_numbers = #tpu.dot_dimension_numbers<[1], [0], [0], [1], [0, 0, 1, 1], [], []>} : vector<8x16xf32>, vector<16x64xf32>, vector<8x64xf32> -> vector<8x64xf32>
    %14 = arith.addf %10, %13 : vector<8x64xf32>
    %c0_18 = arith.constant 0 : index
    %c0_19 = arith.constant 0 : index
    %15 = vector.load %arg9[%c0_18, %c0_19] : memref<1x64xf32, #tpu.memory_space<vmem>>, vector<1x64xf32>
    %16 = vector.broadcast %15 : vector<1x64xf32> to vector<8x64xf32>
    %17 = arith.addf %14, %16 : vector<8x64xf32>
    %18 = vector.extract_strided_slice %17 {offsets = [0, 0], sizes = [8, 32], strides = [1, 1]} : vector<8x64xf32> to vector<8x32xf32>
    %19 = vector.extract_strided_slice %17 {offsets = [0, 32], sizes = [8, 32], strides = [1, 1]} : vector<8x64xf32> to vector<8x32xf32>
    %20 = arith.maximumf %18, %19 : vector<8x32xf32>
    %c0_20 = arith.constant 0 : index
    %c0_21 = arith.constant 0 : index
    %21 = vector.load %arg10[%c0_20, %c0_21] : memref<32x8xf32, #tpu.memory_space<vmem>>, vector<32x8xf32>
    %cst_22 = arith.constant dense<0.000000e+00> : vector<8x8xf32>
    %22 = tpu.matmul %20, %21, %cst_22 {dimension_numbers = #tpu.dot_dimension_numbers<[1], [0], [0], [1], [0, 0, 1, 1], [], []>} : vector<8x32xf32>, vector<32x8xf32>, vector<8x8xf32> -> vector<8x8xf32>
    %c0_23 = arith.constant 0 : index
    %c0_24 = arith.constant 0 : index
    %23 = vector.load %arg11[%c0_23, %c0_24] : memref<1x8xf32, #tpu.memory_space<vmem>>, vector<1x8xf32>
    %24 = vector.broadcast %23 : vector<1x8xf32> to vector<8x8xf32>
    %25 = arith.addf %22, %24 : vector<8x8xf32>
    %c0_25 = arith.constant 0 : index
    %c0_26 = arith.constant 0 : index
    %26 = vector.load %arg12[%c0_25, %c0_26] : memref<8x8xf32, #tpu.memory_space<vmem>>, vector<8x8xf32>
    tpu.vector_store %arg12[%c0_25, %c0_26], %25 {strides = array<i32>} : memref<8x8xf32, #tpu.memory_space<vmem>>, vector<8x8xf32>,
    return
  }
  func.func @transform_0(%arg0: i32) -> (i32, i32) {
    %c0_i32 = arith.constant 0 : i32
    %c0_i32_0 = arith.constant 0 : i32
    return %arg0, %c0_i32 : i32, i32
  }
  func.func @transform_1(%arg0: i32) -> (i32, i32) {
    %c0_i32 = arith.constant 0 : i32
    %c0_i32_0 = arith.constant 0 : i32
    return %arg0, %c0_i32 : i32, i32
  }
  func.func @transform_2(%arg0: i32) -> (i32, i32) {
    %c0_i32 = arith.constant 0 : i32
    %c0_i32_0 = arith.constant 0 : i32
    return %arg0, %c0_i32 : i32, i32
  }
  func.func @transform_3(%arg0: i32) -> (i32, i32) {
    %c0_i32 = arith.constant 0 : i32
    %c0_i32_0 = arith.constant 0 : i32
    return %arg0, %c0_i32 : i32, i32
  }
  func.func @transform_4(%arg0: i32) -> (i32, i32) {
    %c0_i32 = arith.constant 0 : i32
    %c0_i32_0 = arith.constant 0 : i32
    %c0_i32_1 = arith.constant 0 : i32
    return %c0_i32, %c0_i32_0 : i32, i32
  }
  func.func @transform_5(%arg0: i32) -> (i32, i32) {
    %c0_i32 = arith.constant 0 : i32
    %c0_i32_0 = arith.constant 0 : i32
    %c0_i32_1 = arith.constant 0 : i32
    return %c0_i32, %c0_i32_0 : i32, i32
  }
  func.func @transform_6(%arg0: i32) -> (i32, i32) {
    %c0_i32 = arith.constant 0 : i32
    %c0_i32_0 = arith.constant 0 : i32
    %c0_i32_1 = arith.constant 0 : i32
    return %c0_i32, %c0_i32_0 : i32, i32
  }
  func.func @transform_7(%arg0: i32) -> (i32, i32) {
    %c0_i32 = arith.constant 0 : i32
    %c0_i32_0 = arith.constant 0 : i32
    %c0_i32_1 = arith.constant 0 : i32
    return %c0_i32, %c0_i32_0 : i32, i32
  }
  func.func @transform_8(%arg0: i32) -> (i32, i32) {
    %c0_i32 = arith.constant 0 : i32
    %c0_i32_0 = arith.constant 0 : i32
    %c0_i32_1 = arith.constant 0 : i32
    return %c0_i32, %c0_i32_0 : i32, i32
  }
  func.func @transform_9(%arg0: i32) -> (i32, i32) {
    %c0_i32 = arith.constant 0 : i32
    %c0_i32_0 = arith.constant 0 : i32
    %c0_i32_1 = arith.constant 0 : i32
    return %c0_i32, %c0_i32_0 : i32, i32
  }
  func.func @transform_10(%arg0: i32) -> (i32, i32) {
    %c0_i32 = arith.constant 0 : i32
    %c0_i32_0 = arith.constant 0 : i32
    %c0_i32_1 = arith.constant 0 : i32
    return %c0_i32, %c0_i32_0 : i32, i32
  }
  func.func @transform_11(%arg0: i32) -> (i32, i32) {
    %c0_i32 = arith.constant 0 : i32
    %c0_i32_0 = arith.constant 0 : i32
    return %arg0, %c0_i32 : i32, i32
  }
}

</mosaic_0001>

<llo_original>
// kernel: object_probability_forward.1
$region0: #{object_probability_forward.1}
  #allocation0 [shape = 'u32[]', space=smem, size = 0x4, offset = 0x4, fixed_abs, tag = 'smem constant byte address 0x4 - core index']
  #allocation1 [shape = 'u32[144,128]{1,0:T(1,128)}', space=vmem, size = 0x12000, scoped, tag = 'internal scratch']
  %s0 = inlined_call_operand.hbm [shape: f32[8,32], index: 0, kind: input, shape index: {}]
  %s1 = inlined_call_operand.hbm [shape: f32[8,24], index: 1, kind: input, shape index: {}]
  %s2 = inlined_call_operand.hbm [shape: f32[8,64], index: 2, kind: input, shape index: {}]
  %s3 = inlined_call_operand.hbm [shape: f32[8,16], index: 3, kind: input, shape index: {}]
  %s4 = inlined_call_operand.vmem [shape: f32[32,64], index: 4, kind: input, shape index: {}]
  %s5 = inlined_call_operand.hbm [shape: f32[24,64], index: 5, kind: input, shape index: {}]
  %s6 = inlined_call_operand.hbm [shape: f32[64,64], index: 6, kind: input, shape index: {}]
  %s7 = inlined_call_operand.vmem [shape: f32[16,64], index: 7, kind: input, shape index: {}]
  %s8 = inlined_call_operand.vmem [shape: f32[1,64], index: 8, kind: input, shape index: {}]
  %s9 = inlined_call_operand.vmem [shape: f32[32,8], index: 9, kind: input, shape index: {}]
  %s10 = inlined_call_operand.vmem [shape: f32[1,8], index: 10, kind: input, shape index: {}]
  %s11 = inlined_call_operand.hbm [shape: f32[8,8], index: 11, kind: output, shape index: {}]
  %s12 = sld [smem:[#allocation0]]
  $region78: #{object_probability_forward.1} parent=0
    _
  %s14 = ssub.s32 1, %s12
  %s15 = scalar_select 0, %s14, %s12
  $region1: #{object_probability_forward.1} parent=0
    #allocation2 [shape = 'u8[4096]{0}', space=vmem, size = 0x1000, scoped, tag = 'input window, operand 0, single buffered']
    #allocation3 [shape = 's32[1]{0}', space=sflag, size = 0x4, scoped, tag = 'scoped memory for object_probability_forward.1']
    #allocation4 [shape = 's32[1]{0}', space=sflag, size = 0x4, scoped, tag = 'scoped memory for object_probability_forward.1']
    #allocation5 [shape = 'u8[4096]{0}', space=vmem, size = 0x1000, scoped, tag = 'input window, operand 1, single buffered']
    #allocation6 [shape = 's32[1]{0}', space=sflag, size = 0x4, scoped, tag = 'scoped memory for object_probability_forward.1']
    #allocation7 [shape = 'u8[4096]{0}', space=vmem, size = 0x1000, scoped, tag = 'input window, operand 2, single buffered']
    #allocation8 [shape = 'u8[4096]{0}', space=vmem, size = 0x1000, scoped, tag = 'input window, operand 3, single buffered']
    #allocation9 [shape = 's32[1]{0}', space=sflag, size = 0x4, scoped, tag = 'scoped memory for object_probability_forward.1']
    #allocation10 [shape = 'u8[12288]{0}', space=vmem, size = 0x3000, scoped, tag = 'input window, operand 5, single buffered']
    #allocation11 [shape = 'u8[32768]{0}', space=vmem, size = 0x8000, scoped, tag = 'input window, operand 6, single buffered']
    #allocation12 [shape = 's32[1]{0}', space=sflag, size = 0x4, scoped, tag = 'scoped memory for object_probability_forward.1']
    #allocation13 [shape = 'u8[4096]{0}', space=vmem, size = 0x1000, scoped, tag = 'output window, operand 0, single buffered']
    %16 = vsyncpa [#allocation3], 0
    %17 = vsyncpa [#allocation6], 0
    %18 = vsyncpa [#allocation9], 0
    %19 = vsyncpa [#allocation12], 0
    %20 = vsyncpa [#allocation4], 0
    // Predicated region
    $region2: #{object_probability_forward.1} parent=1 // pred_check
      _
    $region3: #{object_probability_forward.1} parent=1 // pred_check_branch
      %22 = sbr.rel (0) target = $region5
    $region4: #{object_probability_forward.1} parent=1 // pred_region
      %s24 = ssub.s32 128, 128
      %25 = vsyncadd [#allocation3], %s24
      %s27 = sshll.u32 [#allocation2], 4
      %s28 = int_to_ptr.vmem [resolvable:$true] %s27
      %30 = dma.hbm_to_vmem [thread:$0]  %s0, 128, %s28, [#allocation3]
    $region5: #{object_probability_forward.1} parent=1 // pred_fallthru
      _
    // Predicated region
    $region6: #{object_probability_forward.1} parent=1 // pred_check
      _
    $region7: #{object_probability_forward.1} parent=1 // pred_check_branch
      %32 = sbr.rel (0) target = $region9
    $region8: #{object_probability_forward.1} parent=1 // pred_region
      %s34 = ssub.s32 128, 128
      %35 = vsyncadd [#allocation6], %s34
      %s37 = sshll.u32 [#allocation5], 4
      %s38 = int_to_ptr.vmem [resolvable:$true] %s37
      %40 = dma.hbm_to_vmem [thread:$0]  %s1, 128, %s38, [#allocation6]
    $region9: #{object_probability_forward.1} parent=1 // pred_fallthru
      _
    // Predicated region
    $region10: #{object_probability_forward.1} parent=1 // pred_check
      _
    $region11: #{object_probability_forward.1} parent=1 // pred_check_branch
      %42 = sbr.rel (0) target = $region13
    $region12: #{object_probability_forward.1} parent=1 // pred_region
      %s44 = ssub.s32 128, 128
      %45 = vsyncadd [#allocation6], %s44
      %s47 = sshll.u32 [#allocation7], 4
      %s48 = int_to_ptr.vmem [resolvable:$true] %s47
      %50 = dma.hbm_to_vmem [thread:$0]  %s2, 128, %s48, [#allocation6]
    $region13: #{object_probability_forward.1} parent=1 // pred_fallthru
      _
    // Predicated region
    $region14: #{object_probability_forward.1} parent=1 // pred_check
      _
    $region15: #{object_probability_forward.1} parent=1 // pred_check_branch
      %52 = sbr.rel (0) target = $region17
    $region16: #{object_probability_forward.1} parent=1 // pred_region
      %s54 = ssub.s32 128, 128
      %55 = vsyncadd [#allocation9], %s54
      %s57 = sshll.u32 [#allocation8], 4
      %s58 = int_to_ptr.vmem [resolvable:$true] %s57
      %60 = dma.hbm_to_vmem [thread:$0]  %s3, 128, %s58, [#allocation9]
    $region17: #{object_probability_forward.1} parent=1 // pred_fallthru
      _
    // Predicated region
    $region18: #{object_probability_forward.1} parent=1 // pred_check
      _
    $region19: #{object_probability_forward.1} parent=1 // pred_check_branch
      %62 = sbr.rel (0) target = $region21
    $region20: #{object_probability_forward.1} parent=1 // pred_region
      _
    $region21: #{object_probability_forward.1} parent=1 // pred_fallthru
      _
    // Predicated region
    $region22: #{object_probability_forward.1} parent=1 // pred_check
      _
    $region23: #{object_probability_forward.1} parent=1 // pred_check_branch
      %64 = sbr.rel (0) target = $region25
    $region24: #{object_probability_forward.1} parent=1 // pred_region
      %s66 = ssub.s32 384, 384
      %67 = vsyncadd [#allocation9], %s66
      %s68 = sshll.u32 [#allocation10], 4
      %s69 = int_to_ptr.vmem [resolvable:$true] %s68
      %74 = dma.hbm_to_vmem [thread:$0]  %s5, 384, %s69, [#allocation9], 128, 128, 8
    $region25: #{object_probability_forward.1} parent=1 // pred_fallthru
      _
    // Predicated region
    $region26: #{object_probability_forward.1} parent=1 // pred_check
      _
    $region27: #{object_probability_forward.1} parent=1 // pred_check_branch
      %76 = sbr.rel (0) target = $region29
    $region28: #{object_probability_forward.1} parent=1 // pred_region
      %s78 = ssub.s32 1024, 1024
      %79 = vsyncadd [#allocation12], %s78
      %s80 = sshll.u32 [#allocation11], 4
      %s81 = int_to_ptr.vmem [resolvable:$true] %s80
      %86 = dma.hbm_to_vmem [thread:$0]  %s6, 1024, %s81, [#allocation12], 128, 128, 8
    $region29: #{object_probability_forward.1} parent=1 // pred_fallthru
      _
    // Predicated region
    $region30: #{object_probability_forward.1} parent=1 // pred_check
      _
    $region31: #{object_probability_forward.1} parent=1 // pred_check_branch
      %88 = sbr.rel (0) target = $region33
    $region32: #{object_probability_forward.1} parent=1 // pred_region
      _
    $region33: #{object_probability_forward.1} parent=1 // pred_fallthru
      _
    // Predicated region
    $region34: #{object_probability_forward.1} parent=1 // pred_check
      _
    $region35: #{object_probability_forward.1} parent=1 // pred_check_branch
      %90 = sbr.rel (0) target = $region37
    $region36: #{object_probability_forward.1} parent=1 // pred_region
      _
    $region37: #{object_probability_forward.1} parent=1 // pred_fallthru
      _
    // Predicated region
    $region38: #{object_probability_forward.1} parent=1 // pred_check
      _
    $region39: #{object_probability_forward.1} parent=1 // pred_check_branch
      %92 = sbr.rel (0) target = $region41
    $region40: #{object_probability_forward.1} parent=1 // pred_region
      _
    $region41: #{object_probability_forward.1} parent=1 // pred_fallthru
      _
    // Predicated region
    $region42: #{object_probability_forward.1} parent=1 // pred_check
      _
    $region43: #{object_probability_forward.1} parent=1 // pred_check_branch
      %94 = sbr.rel (0) target = $region45
    $region44: #{object_probability_forward.1} parent=1 // pred_region
      _
    $region45: #{object_probability_forward.1} parent=1 // pred_fallthru
      _
    // Predicated region
    $region46: #{object_probability_forward.1} parent=1 // pred_check
      _
    $region47: #{object_probability_forward.1} parent=1 // pred_check_branch
      %96 = sbr.rel (0) target = $region49
    $region48: #{object_probability_forward.1} parent=1 // pred_region
      %97 = dma.done [#allocation3], 128
    $region49: #{object_probability_forward.1} parent=1 // pred_fallthru
      _
    // Predicated region
    $region50: #{object_probability_forward.1} parent=1 // pred_check
      _
    $region51: #{object_probability_forward.1} parent=1 // pred_check_branch
      %99 = sbr.rel (0) target = $region53
    $region52: #{object_probability_forward.1} parent=1 // pred_region
      %100 = dma.done [#allocation6], 128
    $region53: #{object_probability_forward.1} parent=1 // pred_fallthru
      _
    // Predicated region
    $region54: #{object_probability_forward.1} parent=1 // pred_check
      _
    $region55: #{object_probability_forward.1} parent=1 // pred_check_branch
      %102 = sbr.rel (0) target = $region57
    $region56: #{object_probability_forward.1} parent=1 // pred_region
      %103 = dma.done [#allocation6], 128
    $region57: #{object_probability_forward.1} parent=1 // pred_fallthru
      _
    // Predicated region
    $region58: #{object_probability_forward.1} parent=1 // pred_check
      _
    $region59: #{object_probability_forward.1} parent=1 // pred_check_branch
      %105 = sbr.rel (0) target = $region61
    $region60: #{object_probability_forward.1} parent=1 // pred_region
      %106 = dma.done [#allocation9], 128
    $region61: #{object_probability_forward.1} parent=1 // pred_fallthru
      _
    // Predicated region
    $region62: #{object_probability_forward.1} parent=1 // pred_check
      _
    $region63: #{object_probability_forward.1} parent=1 // pred_check_branch
      %108 = sbr.rel (0) target = $region65
    $region64: #{object_probability_forward.1} parent=1 // pred_region
      %109 = dma.done [#allocation9], 384
    $region65: #{object_probability_forward.1} parent=1 // pred_fallthru
      _
    // Predicated region
    $region66: #{object_probability_forward.1} parent=1 // pred_check
      _
    $region67: #{object_probability_forward.1} parent=1 // pred_check_branch
      %111 = sbr.rel (0) target = $region69
    $region68: #{object_probability_forward.1} parent=1 // pred_region
      %112 = dma.done [#allocation12], 1024
    $region69: #{object_probability_forward.1} parent=1 // pred_fallthru
      _
    %v113 = vld [vmem:[#allocation2] sm:$0xff]
    %v114 = vld [vmem:[%s4] sm:$0xff]
    %v115 = vld [vmem:[%s4 + $0x8] sm:$0xff]
    %v116 = vld [vmem:[%s4 + $0x10] sm:$0xff]
    %v117 = vld [vmem:[%s4 + $0x18] sm:$0xff]
    %v118 = vld [vmem:[#allocation5] sm:$0xff]
    %v119 = vld [vmem:[#allocation10] sm:$0xff]
    %v120 = vld [vmem:[#allocation10 + $0x8] sm:$0xff]
    %v121 = vld [vmem:[#allocation10 + $0x10] sm:$0xff]
    %vm122 = vcmask 195584
    %v124 = vsel %vm122, %v118, 0
    %126 = vmatprep.subr.mxu0 0.0
    %127 = vmatpush1.msra.mxu0 0.0
    %128 = vmatprep.subr.mxu0 0.0
    %129 = vmatpush1.msra.mxu0 0.0
    %130 = vmatprep.subr.mxu0 0.0
    %131 = vmatpush1.msra.mxu0 0.0
    %132 = vmatprep.subr.mxu0 0.0
    %133 = vmatpush1.msra.mxu0 0.0
    %134 = vmatprep.subr.mxu0 0.0
    %135 = vmatpush1.msra.mxu0 0.0
    %136 = vmatprep.subr.mxu0 0.0
    %137 = vmatpush1.msra.mxu0 0.0
    %138 = vmatprep.subr.mxu0 0.0
    %139 = vmatpush1.msra.mxu0 0.0
    %140 = vmatprep.subr.mxu0 0.0
    %141 = vmatpush1.msra.mxu0 0.0
    %142 = vmatprep.subr.mxu0 0.0
    %143 = vmatpush1.msra.mxu0 0.0
    %144 = vmatprep.subr.mxu0 0.0
    %145 = vmatpush1.msra.mxu0 0.0
    %146 = vmatprep.subr.mxu0 0.0
    %147 = vmatpush1.msra.mxu0 0.0
    %148 = vmatprep.subr.mxu0 0.0
    %149 = vmatpush1.msra.mxu0 0.0
    %150 = vmatprep.subr.mxu0 0.0
    %151 = vmatpush1.msra.mxu0 0.0
    %152 = vmatprep.subr.mxu0 0.0
    %153 = vmatpush1.msra.mxu0 %v121
    %154 = vmatprep.subr.mxu0 0.0
    %155 = vmatpush1.msra.mxu0 %v120
    %156 = vmatprep.subr.mxu0 0.0
    %157 = vmatpush1.msra.mxu0 %v119
    %158 = vmatprep.subr.mxu0 0.0
    %159 = vmatpush2.msra.mxu0 0.0
    %160 = vmatprep.subr.mxu0 0.0
    %161 = vmatpush2.msra.mxu0 0.0
    %162 = vmatprep.subr.mxu0 0.0
    %163 = vmatpush2.msra.mxu0 0.0
    %164 = vmatprep.subr.mxu0 0.0
    %165 = vmatpush2.msra.mxu0 0.0
    %166 = vmatprep.subr.mxu0 0.0
    %167 = vmatpush2.msra.mxu0 0.0
    %168 = vmatprep.subr.mxu0 0.0
    %169 = vmatpush2.msra.mxu0 0.0
    %170 = vmatprep.subr.mxu0 0.0
    %171 = vmatpush2.msra.mxu0 0.0
    %172 = vmatprep.subr.mxu0 0.0
    %173 = vmatpush2.msra.mxu0 0.0
    %174 = vmatprep.subr.mxu0 0.0
    %175 = vmatpush2.msra.mxu0 0.0
    %176 = vmatprep.subr.mxu0 0.0
    %177 = vmatpush2.msra.mxu0 0.0
    %178 = vmatprep.subr.mxu0 0.0
    %179 = vmatpush2.msra.mxu0 0.0
    %180 = vmatprep.subr.mxu0 0.0
    %181 = vmatpush2.msra.mxu0 0.0
    %182 = vmatprep.subr.mxu0 0.0
    %183 = vmatpush2.msra.mxu0 0.0
    %184 = vmatprep.subr.mxu0 0.0
    %185 = vmatpush2.msra.mxu0 0.0
    %186 = vmatprep.subr.mxu0 0.0
    %187 = vmatpush2.msra.mxu0 0.0
    %188 = vmatprep.subr.mxu0 0.0
    %189 = vmatpush2.msra.mxu0 0.0
    %190 = vmatprep.mubr.f32.mxu0 0.0
    %191 = vmatmul.mubr.f32.gmra.mxu0 %v124
    %v192 = vpop.f32.mrf.mxu0
    %v193 = vadd.f32 0.0, %v192
    %v194 = vpop.f32.mrf.mxu0
    %195 = vdwg.mxu0
    %vm196 = vcmask 261120
    %v198 = vsel %vm196, %v113, 0
    %200 = vmatprep.subr.mxu0 0.0
    %201 = vmatpush1.msra.mxu0 0.0
    %202 = vmatprep.subr.mxu0 0.0
    %203 = vmatpush1.msra.mxu0 0.0
    %204 = vmatprep.subr.mxu0 0.0
    %205 = vmatpush1.msra.mxu0 0.0
    %206 = vmatprep.subr.mxu0 0.0
    %207 = vmatpush1.msra.mxu0 0.0
    %208 = vmatprep.subr.mxu0 0.0
    %209 = vmatpush1.msra.mxu0 0.0
    %210 = vmatprep.subr.mxu0 0.0
    %211 = vmatpush1.msra.mxu0 0.0
    %212 = vmatprep.subr.mxu0 0.0
    %213 = vmatpush1.msra.mxu0 0.0
    %214 = vmatprep.subr.mxu0 0.0
    %215 = vmatpush1.msra.mxu0 0.0
    %216 = vmatprep.subr.mxu0 0.0
    %217 = vmatpush1.msra.mxu0 0.0
    %218 = vmatprep.subr.mxu0 0.0
    %219 = vmatpush1.msra.mxu0 0.0
    %220 = vmatprep.subr.mxu0 0.0
    %221 = vmatpush1.msra.mxu0 0.0
    %222 = vmatprep.subr.mxu0 0.0
    %223 = vmatpush1.msra.mxu0 0.0
    %224 = vmatprep.subr.mxu0 0.0
    %225 = vmatpush1.msra.mxu0 %v117
    %226 = vmatprep.subr.mxu0 0.0
    %227 = vmatpush1.msra.mxu0 %v116
    %228 = vmatprep.subr.mxu0 0.0
    %229 = vmatpush1.msra.mxu0 %v115
    %230 = vmatprep.subr.mxu0 0.0
    %231 = vmatpush1.msra.mxu0 %v114
    %232 = vmatprep.subr.mxu0 0.0
    %233 = vmatpush2.msra.mxu0 0.0
    %234 = vmatprep.subr.mxu0 0.0
    %235 = vmatpush2.msra.mxu0 0.0
    %236 = vmatprep.subr.mxu0 0.0
    %237 = vmatpush2.msra.mxu0 0.0
    %238 = vmatprep.subr.mxu0 0.0
    %239 = vmatpush2.msra.mxu0 0.0
    %240 = vmatprep.subr.mxu0 0.0
    %241 = vmatpush2.msra.mxu0 0.0
    %242 = vmatprep.subr.mxu0 0.0
    %243 = vmatpush2.msra.mxu0 0.0
    %244 = vmatprep.subr.mxu0 0.0
    %245 = vmatpush2.msra.mxu0 0.0
    %246 = vmatprep.subr.mxu0 0.0
    %247 = vmatpush2.msra.mxu0 0.0
    %248 = vmatprep.subr.mxu0 0.0
    %249 = vmatpush2.msra.mxu0 0.0
    %250 = vmatprep.subr.mxu0 0.0
    %251 = vmatpush2.msra.mxu0 0.0
    %252 = vmatprep.subr.mxu0 0.0
    %253 = vmatpush2.msra.mxu0 0.0
    %254 = vmatprep.subr.mxu0 0.0
    %255 = vmatpush2.msra.mxu0 0.0
    %256 = vmatprep.subr.mxu0 0.0
    %257 = vmatpush2.msra.mxu0 0.0
    %258 = vmatprep.subr.mxu0 0.0
    %259 = vmatpush2.msra.mxu0 0.0
    %260 = vmatprep.subr.mxu0 0.0
    %261 = vmatpush2.msra.mxu0 0.0
    %262 = vmatprep.subr.mxu0 0.0
    %263 = vmatpush2.msra.mxu0 0.0
    %264 = vmatprep.mubr.f32.mxu0 0.0
    %265 = vmatmul.mubr.f32.gmra.mxu0 %v198
    %v266 = vpop.f32.mrf.mxu0
    %v267 = vadd.f32 %v193, %v266
    %v268 = vpop.f32.mrf.mxu0
    %269 = vdwg.mxu0
    %v270 = vld [vmem:[#allocation7] sm:$0xff]
    %v271 = vld [vmem:[#allocation11] sm:$0xff]
    %v272 = vld [vmem:[#allocation11 + $0x8] sm:$0xff]
    %v273 = vld [vmem:[#allocation11 + $0x10] sm:$0xff]
    %v274 = vld [vmem:[#allocation11 + $0x18] sm:$0xff]
    %v275 = vld [vmem:[#allocation11 + $0x20] sm:$0xff]
    %v276 = vld [vmem:[#allocation11 + $0x28] sm:$0xff]
    %v277 = vld [vmem:[#allocation11 + $0x30] sm:$0xff]
    %v278 = vld [vmem:[#allocation11 + $0x38] sm:$0xff]
    %vm279 = vcmask 523264
    %v281 = vsel %vm279, %v270, 0
    %283 = vmatprep.subr.mxu0 0.0
    %284 = vmatpush1.msra.mxu0 0.0
    %285 = vmatprep.subr.mxu0 0.0
    %286 = vmatpush1.msra.mxu0 0.0
    %287 = vmatprep.subr.mxu0 0.0
    %288 = vmatpush1.msra.mxu0 0.0
    %289 = vmatprep.subr.mxu0 0.0
    %290 = vmatpush1.msra.mxu0 0.0
    %291 = vmatprep.subr.mxu0 0.0
    %292 = vmatpush1.msra.mxu0 0.0
    %293 = vmatprep.subr.mxu0 0.0
    %294 = vmatpush1.msra.mxu0 0.0
    %295 = vmatprep.subr.mxu0 0.0
    %296 = vmatpush1.msra.mxu0 0.0
    %297 = vmatprep.subr.mxu0 0.0
    %298 = vmatpush1.msra.mxu0 0.0
    %299 = vmatprep.subr.mxu0 0.0
    %300 = vmatpush1.msra.mxu0 %v278
    %301 = vmatprep.subr.mxu0 0.0
    %302 = vmatpush1.msra.mxu0 %v277
    %303 = vmatprep.subr.mxu0 0.0
    %304 = vmatpush1.msra.mxu0 %v276
    %305 = vmatprep.subr.mxu0 0.0
    %306 = vmatpush1.msra.mxu0 %v275
    %307 = vmatprep.subr.mxu0 0.0
    %308 = vmatpush1.msra.mxu0 %v274
    %309 = vmatprep.subr.mxu0 0.0
    %310 = vmatpush1.msra.mxu0 %v273
    %311 = vmatprep.subr.mxu0 0.0
    %312 = vmatpush1.msra.mxu0 %v272
    %313 = vmatprep.subr.mxu0 0.0
    %314 = vmatpush1.msra.mxu0 %v271
    %315 = vmatprep.subr.mxu0 0.0
    %316 = vmatpush2.msra.mxu0 0.0
    %317 = vmatprep.subr.mxu0 0.0
    %318 = vmatpush2.msra.mxu0 0.0
    %319 = vmatprep.subr.mxu0 0.0
    %320 = vmatpush2.msra.mxu0 0.0
    %321 = vmatprep.subr.mxu0 0.0
    %322 = vmatpush2.msra.mxu0 0.0
    %323 = vmatprep.subr.mxu0 0.0
    %324 = vmatpush2.msra.mxu0 0.0
    %325 = vmatprep.subr.mxu0 0.0
    %326 = vmatpush2.msra.mxu0 0.0
    %327 = vmatprep.subr.mxu0 0.0
    %328 = vmatpush2.msra.mxu0 0.0
    %329 = vmatprep.subr.mxu0 0.0
    %330 = vmatpush2.msra.mxu0 0.0
    %331 = vmatprep.subr.mxu0 0.0
    %332 = vmatpush2.msra.mxu0 0.0
    %333 = vmatprep.subr.mxu0 0.0
    %334 = vmatpush2.msra.mxu0 0.0
    %335 = vmatprep.subr.mxu0 0.0
    %336 = vmatpush2.msra.mxu0 0.0
    %337 = vmatprep.subr.mxu0 0.0
    %338 = vmatpush2.msra.mxu0 0.0
    %339 = vmatprep.subr.mxu0 0.0
    %340 = vmatpush2.msra.mxu0 0.0
    %341 = vmatprep.subr.mxu0 0.0
    %342 = vmatpush2.msra.mxu0 0.0
    %343 = vmatprep.subr.mxu0 0.0
    %344 = vmatpush2.msra.mxu0 0.0
    %345 = vmatprep.subr.mxu0 0.0
    %346 = vmatpush2.msra.mxu0 0.0
    %347 = vmatprep.mubr.f32.mxu0 0.0
    %348 = vmatmul.mubr.f32.gmra.mxu0 %v281
    %v349 = vpop.f32.mrf.mxu0
    %v350 = vadd.f32 0.0, %v349
    %v351 = vpop.f32.mrf.mxu0
    %352 = vdwg.mxu0
    %v353 = vadd.f32 %v267, %v350
    %v354 = vld [vmem:[#allocation8] sm:$0xff]
    %v355 = vld [vmem:[%s7] sm:$0xff]
    %v356 = vld [vmem:[%s7 + $0x8] sm:$0xff]
    %vm357 = vcmask 130048
    %v359 = vsel %vm357, %v354, 0
    %361 = vmatprep.subr.mxu0 0.0
    %362 = vmatpush1.msra.mxu0 0.0
    %363 = vmatprep.subr.mxu0 0.0
    %364 = vmatpush1.msra.mxu0 0.0
    %365 = vmatprep.subr.mxu0 0.0
    %366 = vmatpush1.msra.mxu0 0.0
    %367 = vmatprep.subr.mxu0 0.0
    %368 = vmatpush1.msra.mxu0 0.0
    %369 = vmatprep.subr.mxu0 0.0
    %370 = vmatpush1.msra.mxu0 0.0
    %371 = vmatprep.subr.mxu0 0.0
    %372 = vmatpush1.msra.mxu0 0.0
    %373 = vmatprep.subr.mxu0 0.0
    %374 = vmatpush1.msra.mxu0 0.0
    %375 = vmatprep.subr.mxu0 0.0
    %376 = vmatpush1.msra.mxu0 0.0
    %377 = vmatprep.subr.mxu0 0.0
    %378 = vmatpush1.msra.mxu0 0.0
    %379 = vmatprep.subr.mxu0 0.0
    %380 = vmatpush1.msra.mxu0 0.0
    %381 = vmatprep.subr.mxu0 0.0
    %382 = vmatpush1.msra.mxu0 0.0
    %383 = vmatprep.subr.mxu0 0.0
    %384 = vmatpush1.msra.mxu0 0.0
    %385 = vmatprep.subr.mxu0 0.0
    %386 = vmatpush1.msra.mxu0 0.0
    %387 = vmatprep.subr.mxu0 0.0
    %388 = vmatpush1.msra.mxu0 0.0
    %389 = vmatprep.subr.mxu0 0.0
    %390 = vmatpush1.msra.mxu0 %v356
    %391 = vmatprep.subr.mxu0 0.0
    %392 = vmatpush1.msra.mxu0 %v355
    %393 = vmatprep.subr.mxu0 0.0
    %394 = vmatpush2.msra.mxu0 0.0
    %395 = vmatprep.subr.mxu0 0.0
    %396 = vmatpush2.msra.mxu0 0.0
    %397 = vmatprep.subr.mxu0 0.0
    %398 = vmatpush2.msra.mxu0 0.0
    %399 = vmatprep.subr.mxu0 0.0
    %400 = vmatpush2.msra.mxu0 0.0
    %401 = vmatprep.subr.mxu0 0.0
    %402 = vmatpush2.msra.mxu0 0.0
    %403 = vmatprep.subr.mxu0 0.0
    %404 = vmatpush2.msra.mxu0 0.0
    %405 = vmatprep.subr.mxu0 0.0
    %406 = vmatpush2.msra.mxu0 0.0
    %407 = vmatprep.subr.mxu0 0.0
    %408 = vmatpush2.msra.mxu0 0.0
    %409 = vmatprep.subr.mxu0 0.0
    %410 = vmatpush2.msra.mxu0 0.0
    %411 = vmatprep.subr.mxu0 0.0
    %412 = vmatpush2.msra.mxu0 0.0
    %413 = vmatprep.subr.mxu0 0.0
    %414 = vmatpush2.msra.mxu0 0.0
    %415 = vmatprep.subr.mxu0 0.0
    %416 = vmatpush2.msra.mxu0 0.0
    %417 = vmatprep.subr.mxu0 0.0
    %418 = vmatpush2.msra.mxu0 0.0
    %419 = vmatprep.subr.mxu0 0.0
    %420 = vmatpush2.msra.mxu0 0.0
    %421 = vmatprep.subr.mxu0 0.0
    %422 = vmatpush2.msra.mxu0 0.0
    %423 = vmatprep.subr.mxu0 0.0
    %424 = vmatpush2.msra.mxu0 0.0
    %425 = vmatprep.mubr.f32.mxu0 0.0
    %426 = vmatmul.mubr.f32.gmra.mxu0 %v359
    %v427 = vpop.f32.mrf.mxu0
    %v428 = vadd.f32 0.0, %v427
    %v429 = vpop.f32.mrf.mxu0
    %430 = vdwg.mxu0
    %v431 = vadd.f32 %v353, %v428
    %v432 = vld [vmem:[%s8] sm:$0x1]
    %v434 = vlaneseq
    %v435 = vshrl.u32 %v434, 7
    %v436 = vsub.s32 0, %v435
    %v437 = vrot.slane %v432, %v436
    %v439 = vadd.f32 %v431, %v437
    %441 = vrot.lane.b32.xlu0 %v439, 96
    %v442 = vpop.permute.xlu0 %441
    %v444 = vmax.f32 %v439, %v442
    %v445 = vld [vmem:[%s9] sm:$0xff]
    %v446 = vld [vmem:[%s9 + $0x8] sm:$0xff]
    %v447 = vld [vmem:[%s9 + $0x10] sm:$0xff]
    %v448 = vld [vmem:[%s9 + $0x18] sm:$0xff]
    %v449 = vld [vmem:[%s10] sm:$0x1]
    %v451 = vlaneseq
    %v452 = vshrl.u32 %v451, 7
    %v453 = vsub.s32 0, %v452
    %v454 = vrot.slane %v449, %v453
    %v457 = vsel %vm196, %v444, 0
    %459 = vmatprep.subr.mxu0 0.0
    %460 = vmatpush1.msra.mxu0 0.0
    %461 = vmatprep.subr.mxu0 0.0
    %462 = vmatpush1.msra.mxu0 0.0
    %463 = vmatprep.subr.mxu0 0.0
    %464 = vmatpush1.msra.mxu0 0.0
    %465 = vmatprep.subr.mxu0 0.0
    %466 = vmatpush1.msra.mxu0 0.0
    %467 = vmatprep.subr.mxu0 0.0
    %468 = vmatpush1.msra.mxu0 0.0
    %469 = vmatprep.subr.mxu0 0.0
    %470 = vmatpush1.msra.mxu0 0.0
    %471 = vmatprep.subr.mxu0 0.0
    %472 = vmatpush1.msra.mxu0 0.0
    %473 = vmatprep.subr.mxu0 0.0
    %474 = vmatpush1.msra.mxu0 0.0
    %475 = vmatprep.subr.mxu0 0.0
    %476 = vmatpush1.msra.mxu0 0.0
    %477 = vmatprep.subr.mxu0 0.0
    %478 = vmatpush1.msra.mxu0 0.0
    %479 = vmatprep.subr.mxu0 0.0
    %480 = vmatpush1.msra.mxu0 0.0
    %481 = vmatprep.subr.mxu0 0.0
    %482 = vmatpush1.msra.mxu0 0.0
    %483 = vmatprep.subr.mxu0 0.0
    %484 = vmatpush1.msra.mxu0 %v448
    %485 = vmatprep.subr.mxu0 0.0
    %486 = vmatpush1.msra.mxu0 %v447
    %487 = vmatprep.subr.mxu0 0.0
    %488 = vmatpush1.msra.mxu0 %v446
    %489 = vmatprep.subr.mxu0 0.0
    %490 = vmatpush1.msra.mxu0 %v445
    %491 = vmatprep.subr.mxu0 0.0
    %492 = vmatpush2.msra.mxu0 0.0
    %493 = vmatprep.subr.mxu0 0.0
    %494 = vmatpush2.msra.mxu0 0.0
    %495 = vmatprep.subr.mxu0 0.0
    %496 = vmatpush2.msra.mxu0 0.0
    %497 = vmatprep.subr.mxu0 0.0
    %498 = vmatpush2.msra.mxu0 0.0
    %499 = vmatprep.subr.mxu0 0.0
    %500 = vmatpush2.msra.mxu0 0.0
    %501 = vmatprep.subr.mxu0 0.0
    %502 = vmatpush2.msra.mxu0 0.0
    %503 = vmatprep.subr.mxu0 0.0
    %504 = vmatpush2.msra.mxu0 0.0
    %505 = vmatprep.subr.mxu0 0.0
    %506 = vmatpush2.msra.mxu0 0.0
    %507 = vmatprep.subr.mxu0 0.0
    %508 = vmatpush2.msra.mxu0 0.0
    %509 = vmatprep.subr.mxu0 0.0
    %510 = vmatpush2.msra.mxu0 0.0
    %511 = vmatprep.subr.mxu0 0.0
    %512 = vmatpush2.msra.mxu0 0.0
    %513 = vmatprep.subr.mxu0 0.0
    %514 = vmatpush2.msra.mxu0 0.0
    %515 = vmatprep.subr.mxu0 0.0
    %516 = vmatpush2.msra.mxu0 0.0
    %517 = vmatprep.subr.mxu0 0.0
    %518 = vmatpush2.msra.mxu0 0.0
    %519 = vmatprep.subr.mxu0 0.0
    %520 = vmatpush2.msra.mxu0 0.0
    %521 = vmatprep.subr.mxu0 0.0
    %522 = vmatpush2.msra.mxu0 0.0
    %523 = vmatprep.mubr.f32.mxu0 0.0
    %524 = vmatmul.mubr.f32.gmra.mxu0 %v457
    %v525 = vpop.f32.mrf.mxu0
    %v526 = vadd.f32 %v454, %v525
    %v527 = vpop.f32.mrf.mxu0
    %528 = vdwg.mxu0
    %vm529 = vcmask 64512
    %530 = vst.msk [vmem:[#allocation13] sm:$0xff] %vm529, %v526
    // Predicated region
    $region70: #{object_probability_forward.1} parent=1 // pred_check
      _
    $region71: #{object_probability_forward.1} parent=1 // pred_check_branch
      %532 = sbr.rel (0) target = $region73
    $region72: #{object_probability_forward.1} parent=1 // pred_region
      %s534 = ssub.s32 128, 128
      %535 = vsyncadd [#allocation4], %s534
      %s537 = sshll.u32 [#allocation13], 4
      %s538 = int_to_ptr.vmem [resolvable:$true] %s537
      %540 = dma.vmem_to_hbm [thread:$0]  %s538, 128, %s11, [#allocation4]
    $region73: #{object_probability_forward.1} parent=1 // pred_fallthru
      _
    // Predicated region
    $region74: #{object_probability_forward.1} parent=1 // pred_check
      _
    $region75: #{object_probability_forward.1} parent=1 // pred_check_branch
      %542 = sbr.rel (0) target = $region77
    $region76: #{object_probability_forward.1} parent=1 // pred_region
      %543 = dma.done [#allocation4], 128
    $region77: #{object_probability_forward.1} parent=1 // pred_fallthru
      _
    %544 = vsyncpa [#allocation3], 1
    %545 = vsyncpa [#allocation6], 1
    %546 = vsyncpa [#allocation9], 1
    %547 = vsyncpa [#allocation12], 1
    %548 = vsyncpa [#allocation4], 1

</llo_original>
